<compile_context>
chip_gen: v6e
topology: v6e:2x2x1
jax: 0.10.0
libtpu: 0.0.40
codegen_flags: <defaults>
</compile_context>

<pallas_src>
import jax
import jax.numpy as jnp
from jax import lax
from jax.experimental import pallas as pl
from jax.experimental.pallas import tpu as pltpu


def node_cls_kernel(ids_ref, emb_ref, w_ref, b_ref, out_ref):
    # ids_ref : VMEM (TB, 1)  int32  node indices for this batch tile
    # emb_ref : VMEM (N, D)   f32    full embedding table (resident in VMEM)
    # w_ref   : VMEM (D, Cp)  f32    fc weight (transposed vs torch), lane-padded
    # b_ref   : VMEM (1, Cp)  f32    fc bias, lane-padded
    # out_ref : VMEM (TB, Cp) f32    logits tile
    ids = ids_ref[...]                          # (TB, 1)
    tb = ids.shape[0]
    n = emb_ref.shape[0]
    # One-hot gather on the MXU: (TB, N) @ (N, D) -> gathered embedding rows.
    # Exact (each row is 1 * emb_row), avoids per-row DMAs and dynamic gathers.
    one_hot = (ids == lax.broadcasted_iota(jnp.int32, (tb, n), 1)).astype(jnp.float32)
    rows = jnp.dot(one_hot, emb_ref[...], preferred_element_type=jnp.float32)
    out_ref[...] = (
        jnp.dot(rows, w_ref[...], preferred_element_type=jnp.float32) + b_ref[...]
    )


def node_classification(node_ids, emb_table, w, b, *, tile_b=128):
    """node_ids: (B,) int; emb_table: (N, D); w: (D, C) (transposed vs torch); b: (C,)."""
    B = node_ids.shape[0]
    N, D = emb_table.shape
    C = w.shape[1]

    # Lane-dense output: pad num_class up to a multiple of 128.
    Cp = pl.cdiv(C, 128) * 128
    # Batch tile: multiple of 8 sublanes, at most tile_b (collapses to one
    # grid step for small B).
    TB = min(tile_b, pl.cdiv(B, 8) * 8)
    Bp = pl.cdiv(B, TB) * TB

    # Validate / pad node ids (padding rows use index 0; sliced off below).
    ids = jnp.clip(node_ids.astype(jnp.int32), 0, N - 1)
    ids = jnp.pad(ids, (0, Bp - B)).reshape(Bp, 1)

    emb = emb_table.astype(jnp.float32)
    w_p = jnp.zeros((D, Cp), jnp.float32).at[:, :C].set(w.astype(jnp.float32))
    b_p = jnp.zeros((1, Cp), jnp.float32).at[:, :C].set(b.astype(jnp.float32))

    out = pl.pallas_call(
        node_cls_kernel,
        out_shape=jax.ShapeDtypeStruct((Bp, Cp), jnp.float32),
        grid=(Bp // TB,),
        in_specs=[
            pl.BlockSpec((TB, 1), lambda i: (i, 0)),     # ids tile
            pl.BlockSpec((N, D), lambda i: (0, 0)),      # full emb table, VMEM-resident
            pl.BlockSpec((D, Cp), lambda i: (0, 0)),     # fc weight (padded)
            pl.BlockSpec((1, Cp), lambda i: (0, 0)),     # fc bias (padded)
        ],
        out_specs=pl.BlockSpec((TB, Cp), lambda i: (i, 0)),
        compiler_params=pltpu.CompilerParams(
            dimension_semantics=("parallel",)            # batch tiles are independent
        ),
    )(ids, emb, w_p, b_p)

    return out[:B, :C]


if __name__ == "__main__":
    # Small, deterministic setup consistent with the module:
    #   emb: [num_nodes, emb_dim], fc: Linear(emb_dim -> num_class=7)
    num_nodes, emb_dim, num_class, batch = 16, 32, 7, 8

    key = jax.random.PRNGKey(0)
    k_emb, k_w, k_b, k_idx = jax.random.split(key, 4)

    # Frozen "pretrained" embedding table (synthetic, deterministic).
    emb_table = jax.random.normal(k_emb, (num_nodes, emb_dim), dtype=jnp.float32)

    # nn.Linear-style init: U(-1/sqrt(D), 1/sqrt(D)); weight stored as (D, C).
    bound = 1.0 / (emb_dim ** 0.5)
    w = jax.random.uniform(k_w, (emb_dim, num_class),
                           minval=-bound, maxval=bound, dtype=jnp.float32)
    b = jax.random.uniform(k_b, (num_class,),
                           minval=-bound, maxval=bound, dtype=jnp.float32)

    # Input node indices (the `node` argument of forward()).
    node = jax.random.randint(k_idx, (batch,), 0, num_nodes, dtype=jnp.int32)

    out = node_classification(node, emb_table, w, b)
    out = jax.block_until_ready(out)

    # Pure-JAX reference: emb lookup then fc (no softmax in forward()).
    ref = jnp.take(emb_table, node, axis=0) @ w + b

    assert out.shape == (batch, num_class)
    assert jnp.allclose(out, ref, atol=1e-5, rtol=1e-5), "mismatch vs reference"
    print("KERNEL_OK")
</pallas_src>

<mosaic_0001>
module attributes {stable_mosaic.version = 11 : i64} {
  func.func @node_cls_kernel(%arg0: i32, %arg1: memref<8x1xi32, #tpu.memory_space<vmem>>, %arg2: memref<16x32xf32, #tpu.memory_space<vmem>>, %arg3: memref<32x128xf32, #tpu.memory_space<vmem>>, %arg4: memref<1x128xf32, #tpu.memory_space<vmem>>, %arg5: memref<8x128xf32, #tpu.memory_space<vmem>>) attributes {dimension_semantics = [#tpu.dimension_semantics<parallel>], iteration_bounds = array<i64: 1>, scalar_prefetch = 0 : i64, scratch_operands = 0 : i64, tpu.core_type = #tpu.core_type<tc>, window_params = [{transform_indices = @transform_0, window_bounds = array<i64: 8, 1>}, {pipeline_mode = #tpu.pipeline_mode<synchronous>, transform_indices = @transform_1, window_bounds = array<i64: 16, 32>}, {pipeline_mode = #tpu.pipeline_mode<synchronous>, transform_indices = @transform_2, window_bounds = array<i64: 32, 128>}, {pipeline_mode = #tpu.pipeline_mode<synchronous>, transform_indices = @transform_3, window_bounds = array<i64: 1, 128>}, {transform_indices = @transform_4, window_bounds = array<i64: 8, 128>}]} {
    %c0 = arith.constant 0 : index
    %c0_0 = arith.constant 0 : index
    %0 = vector.load %arg1[%c0, %c0_0] : memref<8x1xi32, #tpu.memory_space<vmem>>, vector<8x1xi32>
    %1 = tpu.iota {dimensions = array<i32: 1>} : vector<8x16xi32>
    %2 = vector.broadcast %0 : vector<8x1xi32> to vector<8x16xi32>
    %3 = arith.cmpi eq, %2, %1 : vector<8x16xi32>
    %4 = arith.extui %3 : vector<8x16xi1> to vector<8x16xi32>
    %5 = arith.sitofp %4 : vector<8x16xi32> to vector<8x16xf32>
    %c0_1 = arith.constant 0 : index
    %c0_2 = arith.constant 0 : index
    %6 = vector.load %arg2[%c0_1, %c0_2] : memref<16x32xf32, #tpu.memory_space<vmem>>, vector<16x32xf32>
    %cst = arith.constant dense<0.000000e+00> : vector<8x32xf32>
    %7 = tpu.matmul %5, %6, %cst {dimension_numbers = #tpu.dot_dimension_numbers<[1], [0], [0], [1], [0, 0, 1, 1], [], []>} : vector<8x16xf32>, vector<16x32xf32>, vector<8x32xf32> -> vector<8x32xf32>
    %c0_3 = arith.constant 0 : index
    %c0_4 = arith.constant 0 : index
    %8 = vector.load %arg3[%c0_3, %c0_4] : memref<32x128xf32, #tpu.memory_space<vmem>>, vector<32x128xf32>
    %cst_5 = arith.constant dense<0.000000e+00> : vector<8x128xf32>
    %9 = tpu.matmul %7, %8, %cst_5 {dimension_numbers = #tpu.dot_dimension_numbers<[1], [0], [0], [1], [0, 0, 1, 1], [], []>} : vector<8x32xf32>, vector<32x128xf32>, vector<8x128xf32> -> vector<8x128xf32>
    %c0_6 = arith.constant 0 : index
    %c0_7 = arith.constant 0 : index
    %10 = vector.load %arg4[%c0_6, %c0_7] : memref<1x128xf32, #tpu.memory_space<vmem>>, vector<1x128xf32>
    %11 = vector.broadcast %10 : vector<1x128xf32> to vector<8x128xf32>
    %12 = arith.addf %9, %11 : vector<8x128xf32>
    %c0_8 = arith.constant 0 : index
    %c0_9 = arith.constant 0 : index
    %13 = vector.load %arg5[%c0_8, %c0_9] : memref<8x128xf32, #tpu.memory_space<vmem>>, vector<8x128xf32>
    tpu.vector_store %arg5[%c0_8, %c0_9], %12 {strides = array<i32>} : memref<8x128xf32, #tpu.memory_space<vmem>>, vector<8x128xf32>,
    return
  }
  func.func @transform_0(%arg0: i32) -> (i32, i32) {
    %c0_i32 = arith.constant 0 : i32
    %c0_i32_0 = arith.constant 0 : i32
    return %arg0, %c0_i32 : i32, i32
  }
  func.func @transform_1(%arg0: i32) -> (i32, i32) {
    %c0_i32 = arith.constant 0 : i32
    %c0_i32_0 = arith.constant 0 : i32
    %c0_i32_1 = arith.constant 0 : i32
    return %c0_i32, %c0_i32_0 : i32, i32
  }
  func.func @transform_2(%arg0: i32) -> (i32, i32) {
    %c0_i32 = arith.constant 0 : i32
    %c0_i32_0 = arith.constant 0 : i32
    %c0_i32_1 = arith.constant 0 : i32
    return %c0_i32, %c0_i32_0 : i32, i32
  }
  func.func @transform_3(%arg0: i32) -> (i32, i32) {
    %c0_i32 = arith.constant 0 : i32
    %c0_i32_0 = arith.constant 0 : i32
    %c0_i32_1 = arith.constant 0 : i32
    return %c0_i32, %c0_i32_0 : i32, i32
  }
  func.func @transform_4(%arg0: i32) -> (i32, i32) {
    %c0_i32 = arith.constant 0 : i32
    %c0_i32_0 = arith.constant 0 : i32
    return %arg0, %c0_i32 : i32, i32
  }
}

</mosaic_0001>

<llo_original>
// kernel: tpu_custom_call.1
$region0: #{tpu_custom_call.1}
  #allocation0 [shape = 'u32[]', space=smem, size = 0x4, offset = 0x4, fixed_abs, tag = 'smem constant byte address 0x4 - core index']
  #allocation1 [shape = 'u32[144,128]{1,0:T(1,128)}', space=vmem, size = 0x12000, scoped, tag = 'internal scratch']
  %s0 = inlined_call_operand.vmem [shape: s32[8,1], index: 0, kind: input, shape index: {}]
  %s1 = inlined_call_operand.hbm [shape: f32[16,32], index: 1, kind: input, shape index: {}]
  %s2 = inlined_call_operand.hbm [shape: f32[32,128], index: 2, kind: input, shape index: {}]
  %s3 = inlined_call_operand.vmem [shape: f32[1,128], index: 3, kind: input, shape index: {}]
  %s4 = inlined_call_operand.hbm [shape: f32[8,128], index: 4, kind: output, shape index: {}]
  %s5 = sld [smem:[#allocation0]]
  $region34: #{tpu_custom_call.1} parent=0
    _
  %s7 = ssub.s32 1, %s5
  %s8 = scalar_select 0, %s7, %s5
  $region1: #{tpu_custom_call.1} parent=0
    #allocation2 [shape = 'u8[8192]{0}', space=vmem, size = 0x2000, scoped, tag = 'input window, operand 1, single buffered']
    #allocation3 [shape = 's32[1]{0}', space=sflag, size = 0x4, scoped, tag = 'scoped memory for tpu_custom_call.1']
    #allocation4 [shape = 's32[1]{0}', space=sflag, size = 0x4, scoped, tag = 'scoped memory for tpu_custom_call.1']
    #allocation5 [shape = 'u8[16384]{0}', space=vmem, size = 0x4000, scoped, tag = 'input window, operand 2, single buffered']
    #allocation6 [shape = 's32[1]{0}', space=sflag, size = 0x4, scoped, tag = 'scoped memory for tpu_custom_call.1']
    #allocation7 [shape = 'u8[4096]{0}', space=vmem, size = 0x1000, scoped, tag = 'output window, operand 0, single buffered']
    %9 = vsyncpa [#allocation3], 0
    %10 = vsyncpa [#allocation6], 0
    %11 = vsyncpa [#allocation4], 0
    // Predicated region
    $region2: #{tpu_custom_call.1} parent=1 // pred_check
      _
    $region3: #{tpu_custom_call.1} parent=1 // pred_check_branch
      %13 = sbr.rel (0) target = $region5
    $region4: #{tpu_custom_call.1} parent=1 // pred_region
      _
    $region5: #{tpu_custom_call.1} parent=1 // pred_fallthru
      _
    // Predicated region
    $region6: #{tpu_custom_call.1} parent=1 // pred_check
      _
    $region7: #{tpu_custom_call.1} parent=1 // pred_check_branch
      %15 = sbr.rel (0) target = $region9
    $region8: #{tpu_custom_call.1} parent=1 // pred_region
      %s17 = ssub.s32 256, 256
      %18 = vsyncadd [#allocation3], %s17
      %s19 = sshll.u32 [#allocation2], 4
      %s20 = int_to_ptr.vmem [resolvable:$true] %s19
      %25 = dma.hbm_to_vmem [thread:$0]  %s1, 256, %s20, [#allocation3], 128, 128, 8
    $region9: #{tpu_custom_call.1} parent=1 // pred_fallthru
      _
    // Predicated region
    $region10: #{tpu_custom_call.1} parent=1 // pred_check
      _
    $region11: #{tpu_custom_call.1} parent=1 // pred_check_branch
      %27 = sbr.rel (0) target = $region13
    $region12: #{tpu_custom_call.1} parent=1 // pred_region
      %s29 = ssub.s32 512, 512
      %30 = vsyncadd [#allocation6], %s29
      %s31 = sshll.u32 [#allocation5], 4
      %s32 = int_to_ptr.vmem [resolvable:$true] %s31
      %37 = dma.hbm_to_vmem [thread:$0]  %s2, 512, %s32, [#allocation6], 128, 128, 8
    $region13: #{tpu_custom_call.1} parent=1 // pred_fallthru
      _
    // Predicated region
    $region14: #{tpu_custom_call.1} parent=1 // pred_check
      _
    $region15: #{tpu_custom_call.1} parent=1 // pred_check_branch
      %39 = sbr.rel (0) target = $region17
    $region16: #{tpu_custom_call.1} parent=1 // pred_region
      _
    $region17: #{tpu_custom_call.1} parent=1 // pred_fallthru
      _
    // Predicated region
    $region18: #{tpu_custom_call.1} parent=1 // pred_check
      _
    $region19: #{tpu_custom_call.1} parent=1 // pred_check_branch
      %41 = sbr.rel (0) target = $region21
    $region20: #{tpu_custom_call.1} parent=1 // pred_region
      %42 = dma.done [#allocation3], 256
    $region21: #{tpu_custom_call.1} parent=1 // pred_fallthru
      _
    // Predicated region
    $region22: #{tpu_custom_call.1} parent=1 // pred_check
      _
    $region23: #{tpu_custom_call.1} parent=1 // pred_check_branch
      %44 = sbr.rel (0) target = $region25
    $region24: #{tpu_custom_call.1} parent=1 // pred_region
      %45 = dma.done [#allocation6], 512
    $region25: #{tpu_custom_call.1} parent=1 // pred_fallthru
      _
    %v46 = vld [vmem:[%s0] sm:$0xff]
    %v47 = vlaneseq
    %v48 = vand.u32 %v47, 127
    %49 = vset.pattern.permute.xlu0 0
    %50 = vperm.xlu0 %49, %v46
    %v51 = vpop.permute.xlu0 %50
    %vm52 = vcmp.eq.s32.totalorder %v51, %v48
    %v53 = vsel %vm52, 1, 0
    %v54 = vcvt.s32.f32 %v53
    %v55 = vld [vmem:[#allocation2] sm:$0xff]
    %v56 = vld [vmem:[#allocation2 + $0x8] sm:$0xff]
    %vm57 = vcmask 130048
    %v59 = vsel %vm57, %v54, 0
    %61 = vmatprep.subr.mxu0 0.0
    %62 = vmatpush1.msra.mxu0 0.0
    %63 = vmatprep.subr.mxu0 0.0
    %64 = vmatpush1.msra.mxu0 0.0
    %65 = vmatprep.subr.mxu0 0.0
    %66 = vmatpush1.msra.mxu0 0.0
    %67 = vmatprep.subr.mxu0 0.0
    %68 = vmatpush1.msra.mxu0 0.0
    %69 = vmatprep.subr.mxu0 0.0
    %70 = vmatpush1.msra.mxu0 0.0
    %71 = vmatprep.subr.mxu0 0.0
    %72 = vmatpush1.msra.mxu0 0.0
    %73 = vmatprep.subr.mxu0 0.0
    %74 = vmatpush1.msra.mxu0 0.0
    %75 = vmatprep.subr.mxu0 0.0
    %76 = vmatpush1.msra.mxu0 0.0
    %77 = vmatprep.subr.mxu0 0.0
    %78 = vmatpush1.msra.mxu0 0.0
    %79 = vmatprep.subr.mxu0 0.0
    %80 = vmatpush1.msra.mxu0 0.0
    %81 = vmatprep.subr.mxu0 0.0
    %82 = vmatpush1.msra.mxu0 0.0
    %83 = vmatprep.subr.mxu0 0.0
    %84 = vmatpush1.msra.mxu0 0.0
    %85 = vmatprep.subr.mxu0 0.0
    %86 = vmatpush1.msra.mxu0 0.0
    %87 = vmatprep.subr.mxu0 0.0
    %88 = vmatpush1.msra.mxu0 0.0
    %89 = vmatprep.subr.mxu0 0.0
    %90 = vmatpush1.msra.mxu0 %v56
    %91 = vmatprep.subr.mxu0 0.0
    %92 = vmatpush1.msra.mxu0 %v55
    %93 = vmatprep.subr.mxu0 0.0
    %94 = vmatpush2.msra.mxu0 0.0
    %95 = vmatprep.subr.mxu0 0.0
    %96 = vmatpush2.msra.mxu0 0.0
    %97 = vmatprep.subr.mxu0 0.0
    %98 = vmatpush2.msra.mxu0 0.0
    %99 = vmatprep.subr.mxu0 0.0
    %100 = vmatpush2.msra.mxu0 0.0
    %101 = vmatprep.subr.mxu0 0.0
    %102 = vmatpush2.msra.mxu0 0.0
    %103 = vmatprep.subr.mxu0 0.0
    %104 = vmatpush2.msra.mxu0 0.0
    %105 = vmatprep.subr.mxu0 0.0
    %106 = vmatpush2.msra.mxu0 0.0
    %107 = vmatprep.subr.mxu0 0.0
    %108 = vmatpush2.msra.mxu0 0.0
    %109 = vmatprep.subr.mxu0 0.0
    %110 = vmatpush2.msra.mxu0 0.0
    %111 = vmatprep.subr.mxu0 0.0
    %112 = vmatpush2.msra.mxu0 0.0
    %113 = vmatprep.subr.mxu0 0.0
    %114 = vmatpush2.msra.mxu0 0.0
    %115 = vmatprep.subr.mxu0 0.0
    %116 = vmatpush2.msra.mxu0 0.0
    %117 = vmatprep.subr.mxu0 0.0
    %118 = vmatpush2.msra.mxu0 0.0
    %119 = vmatprep.subr.mxu0 0.0
    %120 = vmatpush2.msra.mxu0 0.0
    %121 = vmatprep.subr.mxu0 0.0
    %122 = vmatpush2.msra.mxu0 0.0
    %123 = vmatprep.subr.mxu0 0.0
    %124 = vmatpush2.msra.mxu0 0.0
    %125 = vmatprep.mubr.f32.mxu0 0.0
    %126 = vmatmul.mubr.f32.gmra.mxu0 %v59
    %v127 = vpop.f32.mrf.mxu0
    %v128 = vadd.f32 0.0, %v127
    %v129 = vpop.f32.mrf.mxu0
    %130 = vdwg.mxu0
    %v131 = vld [vmem:[#allocation5] sm:$0xff]
    %v132 = vld [vmem:[#allocation5 + $0x8] sm:$0xff]
    %v133 = vld [vmem:[#allocation5 + $0x10] sm:$0xff]
    %v134 = vld [vmem:[#allocation5 + $0x18] sm:$0xff]
    %v135 = vld [vmem:[%s3] sm:$0x1]
    %v137 = vlaneseq
    %v138 = vshrl.u32 %v137, 7
    %v139 = vsub.s32 0, %v138
    %v140 = vrot.slane %v135, %v139
    %vm142 = vcmask 261120
    %v144 = vsel %vm142, %v128, 0
    %146 = vmatprep.subr.mxu0 0.0
    %147 = vmatpush1.msra.mxu0 0.0
    %148 = vmatprep.subr.mxu0 0.0
    %149 = vmatpush1.msra.mxu0 0.0
    %150 = vmatprep.subr.mxu0 0.0
    %151 = vmatpush1.msra.mxu0 0.0
    %152 = vmatprep.subr.mxu0 0.0
    %153 = vmatpush1.msra.mxu0 0.0
    %154 = vmatprep.subr.mxu0 0.0
    %155 = vmatpush1.msra.mxu0 0.0
    %156 = vmatprep.subr.mxu0 0.0
    %157 = vmatpush1.msra.mxu0 0.0
    %158 = vmatprep.subr.mxu0 0.0
    %159 = vmatpush1.msra.mxu0 0.0
    %160 = vmatprep.subr.mxu0 0.0
    %161 = vmatpush1.msra.mxu0 0.0
    %162 = vmatprep.subr.mxu0 0.0
    %163 = vmatpush1.msra.mxu0 0.0
    %164 = vmatprep.subr.mxu0 0.0
    %165 = vmatpush1.msra.mxu0 0.0
    %166 = vmatprep.subr.mxu0 0.0
    %167 = vmatpush1.msra.mxu0 0.0
    %168 = vmatprep.subr.mxu0 0.0
    %169 = vmatpush1.msra.mxu0 0.0
    %170 = vmatprep.subr.mxu0 0.0
    %171 = vmatpush1.msra.mxu0 %v134
    %172 = vmatprep.subr.mxu0 0.0
    %173 = vmatpush1.msra.mxu0 %v133
    %174 = vmatprep.subr.mxu0 0.0
    %175 = vmatpush1.msra.mxu0 %v132
    %176 = vmatprep.subr.mxu0 0.0
    %177 = vmatpush1.msra.mxu0 %v131
    %178 = vmatprep.subr.mxu0 0.0
    %179 = vmatpush2.msra.mxu0 0.0
    %180 = vmatprep.subr.mxu0 0.0
    %181 = vmatpush2.msra.mxu0 0.0
    %182 = vmatprep.subr.mxu0 0.0
    %183 = vmatpush2.msra.mxu0 0.0
    %184 = vmatprep.subr.mxu0 0.0
    %185 = vmatpush2.msra.mxu0 0.0
    %186 = vmatprep.subr.mxu0 0.0
    %187 = vmatpush2.msra.mxu0 0.0
    %188 = vmatprep.subr.mxu0 0.0
    %189 = vmatpush2.msra.mxu0 0.0
    %190 = vmatprep.subr.mxu0 0.0
    %191 = vmatpush2.msra.mxu0 0.0
    %192 = vmatprep.subr.mxu0 0.0
    %193 = vmatpush2.msra.mxu0 0.0
    %194 = vmatprep.subr.mxu0 0.0
    %195 = vmatpush2.msra.mxu0 0.0
    %196 = vmatprep.subr.mxu0 0.0
    %197 = vmatpush2.msra.mxu0 0.0
    %198 = vmatprep.subr.mxu0 0.0
    %199 = vmatpush2.msra.mxu0 0.0
    %200 = vmatprep.subr.mxu0 0.0
    %201 = vmatpush2.msra.mxu0 0.0
    %202 = vmatprep.subr.mxu0 0.0
    %203 = vmatpush2.msra.mxu0 0.0
    %204 = vmatprep.subr.mxu0 0.0
    %205 = vmatpush2.msra.mxu0 0.0
    %206 = vmatprep.subr.mxu0 0.0
    %207 = vmatpush2.msra.mxu0 0.0
    %208 = vmatprep.subr.mxu0 0.0
    %209 = vmatpush2.msra.mxu0 0.0
    %210 = vmatprep.mubr.f32.mxu0 0.0
    %211 = vmatmul.mubr.f32.gmra.mxu0 %v144
    %v212 = vpop.f32.mrf.mxu0
    %v213 = vadd.f32 %v140, %v212
    %v214 = vpop.f32.mrf.mxu0
    %215 = vdwg.mxu0
    %216 = vst [vmem:[#allocation7] sm:$0xff] %v213
    // Predicated region
    $region26: #{tpu_custom_call.1} parent=1 // pred_check
      _
    $region27: #{tpu_custom_call.1} parent=1 // pred_check_branch
      %218 = sbr.rel (0) target = $region29
    $region28: #{tpu_custom_call.1} parent=1 // pred_region
      %s220 = ssub.s32 128, 128
      %221 = vsyncadd [#allocation4], %s220
      %s223 = sshll.u32 [#allocation7], 4
      %s224 = int_to_ptr.vmem [resolvable:$true] %s223
      %226 = dma.vmem_to_hbm [thread:$0]  %s224, 128, %s4, [#allocation4]
    $region29: #{tpu_custom_call.1} parent=1 // pred_fallthru
      _
    // Predicated region
    $region30: #{tpu_custom_call.1} parent=1 // pred_check
      _
    $region31: #{tpu_custom_call.1} parent=1 // pred_check_branch
      %228 = sbr.rel (0) target = $region33
    $region32: #{tpu_custom_call.1} parent=1 // pred_region
      %229 = dma.done [#allocation4], 128
    $region33: #{tpu_custom_call.1} parent=1 // pred_fallthru
      _
    %230 = vsyncpa [#allocation3], 1
    %231 = vsyncpa [#allocation6], 1
    %232 = vsyncpa [#allocation4], 1

</llo_original>
